<compile_context>
chip_gen: v7x
topology: tpu7x:2x2x1
jax: 0.10.0
libtpu: 0.0.40
codegen_flags: <defaults>
</compile_context>

<pallas_src>
import functools

import jax
import jax.numpy as jnp
from jax.experimental import pallas as pl
from jax.experimental.pallas import tpu as pltpu


def _round_up(x, m):
    return ((x + m - 1) // m) * m


def _agg_kernel_h_resident(a_ref, h_ref, b_ref, o_ref, *, tk):
    """out_tile = relu(A_tile @ H + b); H fully resident in VMEM, f32 accumulate in o_ref."""
    k = pl.program_id(1)

    @pl.when(k == 0)
    def _():
        o_ref[...] = jnp.zeros_like(o_ref)

    kstart = pl.multiple_of(k * tk, tk)
    o_ref[...] += jnp.dot(a_ref[...], h_ref[pl.ds(kstart, tk), :],
                          preferred_element_type=jnp.float32)

    @pl.when(k == pl.num_programs(1) - 1)
    def _():
        o_ref[...] = jnp.maximum(o_ref[...] + b_ref[...], 0.0)


def _agg_kernel_h_streamed(a_ref, h_ref, b_ref, o_ref):
    """Same as above but H is streamed one (tk, F) block per k step."""
    k = pl.program_id(1)

    @pl.when(k == 0)
    def _():
        o_ref[...] = jnp.zeros_like(o_ref)

    o_ref[...] += jnp.dot(a_ref[...], h_ref[...],
                          preferred_element_type=jnp.float32)

    @pl.when(k == pl.num_programs(1) - 1)
    def _():
        o_ref[...] = jnp.maximum(o_ref[...] + b_ref[...], 0.0)


def gcn_forward(x, edge_index, edge_weight, weight, bias, *, tm=1024, tk=1024):
    """relu(A_hat @ (x @ W) + b) with a tiled, double-buffered Pallas kernel."""
    n = x.shape[0]
    f_out = weight.shape[1]

    # ---- tile sizing / padding (sublane mult of 8, lane mult of 128) ----
    n_m = _round_up(n, 8)
    tm = min(tm, n_m)
    # v7x megacore: prefer at least 2 row tiles so the "parallel" axis can shard
    # across both TensorCores (no-op cost on v5e/v6e).
    if n_m // tm < 2 and n_m >= 16:
        tm = _round_up(max(n_m // 2, 8), 8)
    n_pad_m = _round_up(n, tm)

    tk = min(tk, _round_up(n, 128))
    n_pad_k = _round_up(n, tk)
    f_out_pad = _round_up(f_out, 128)   # lane-dense, unmasked output stores

    grid_m = n_pad_m // tm
    grid_k = n_pad_k // tk

    # ---- graph glue: O(E) degree + normalization fused into one padded scatter ----
    src = edge_index[0]
    dst = edge_index[1]
    deg = jnp.zeros((n,), jnp.float32).at[dst].add(edge_weight)   # in-degree at target
    dinv = jnp.where(deg > 0, jax.lax.rsqrt(deg), 0.0)
    w_norm = dinv[dst] * edge_weight * dinv[src]
    a_p = (jnp.zeros((n_pad_m, n_pad_k), jnp.float32)
           .at[dst, src].add(w_norm)).astype(jnp.bfloat16)

    # ---- hoisted feature transform (tiny matmul) ----
    h = jnp.dot(x, weight, preferred_element_type=jnp.float32)
    h_p = jnp.pad(h, ((0, n_pad_k - n), (0, f_out_pad - f_out))).astype(jnp.bfloat16)
    b_p = jnp.pad(bias.reshape(1, -1).astype(jnp.float32),
                  ((0, 0), (0, f_out_pad - f_out)))

    # ---- H residency decision ----
    h_bytes = n_pad_k * f_out_pad * 2
    h_resident = h_bytes <= (8 << 20)

    if h_resident:
        h_spec = pl.BlockSpec((n_pad_k, f_out_pad), lambda i, k: (0, 0))
        kernel = functools.partial(_agg_kernel_h_resident, tk=tk)
        h_buf_bytes = 2 * h_bytes                      # (worst case double-buffered)
        h_stream_factor = 1
    else:
        h_spec = pl.BlockSpec((tk, f_out_pad), lambda i, k: (k, 0))
        kernel = _agg_kernel_h_streamed
        h_buf_bytes = 2 * tk * f_out_pad * 2
        h_stream_factor = grid_m

    # ---- per-chip VMEM budget with headroom ----
    try:
        phys_vmem = int(getattr(pltpu.get_tpu_info(), "vmem_capacity_bytes",
                                64 * 1024 * 1024))
    except Exception:
        phys_vmem = 64 * 1024 * 1024
    vmem_need = (2 * tm * tk * 2          # A tile (bf16), double-buffered
                 + h_buf_bytes            # H
                 + 2 * f_out_pad * 4      # bias
                 + 2 * tm * f_out_pad * 4)  # output tile (f32), double-buffered
    vmem_limit = int(min(max(2 * vmem_need, 32 * 1024 * 1024),
                         int(0.70 * phys_vmem)))
    vmem_limit = max(vmem_limit, int(1.25 * vmem_need))

    cost = pl.CostEstimate(
        flops=2 * n_pad_m * n_pad_k * f_out_pad,
        transcendentals=0,
        bytes_accessed=(a_p.size * 2
                        + h_p.size * 2 * h_stream_factor
                        + b_p.size * 4
                        + n_pad_m * f_out_pad * 4),
    )

    out = pl.pallas_call(
        kernel,
        out_shape=jax.ShapeDtypeStruct((n_pad_m, f_out_pad), jnp.float32),
        grid=(grid_m, grid_k),
        in_specs=[
            pl.BlockSpec((tm, tk), lambda i, k: (i, k)),   # A_hat (row, K) tile
            h_spec,                                        # H (resident or K-streamed)
            pl.BlockSpec((1, f_out_pad), lambda i, k: (0, 0)),  # bias (resident)
        ],
        out_specs=pl.BlockSpec((tm, f_out_pad), lambda i, k: (i, 0)),
        compiler_params=pltpu.CompilerParams(
            dimension_semantics=("parallel", "arbitrary"),
            vmem_limit_bytes=vmem_limit,
        ),
        cost_estimate=cost,
    )(a_p, h_p, b_p)

    return out[:n, :f_out]


def gcn_simple_forward(inputs, weight, bias):
    """Mirror of GCN_simple.forward: (x, adj, edge_weights) -> (x', adj, edge_weights)."""
    x, adj, edge_weights = inputs
    out = gcn_forward(x, adj, edge_weights, weight, bias)
    return (out, adj, edge_weights)


def _build_normalized_adj_ref(edge_index, edge_weight, num_nodes):
    """Reference-only dense gcn_norm (add_self_loops=False) for the numeric check."""
    src = edge_index[0]
    dst = edge_index[1]
    a = jnp.zeros((num_nodes, num_nodes), jnp.float32)
    a = a.at[dst, src].add(edge_weight)
    deg = a.sum(axis=1)
    deg_inv_sqrt = jnp.where(deg > 0, jax.lax.rsqrt(deg), 0.0)
    return deg_inv_sqrt[:, None] * a * deg_inv_sqrt[None, :]


if __name__ == "__main__":
    key = jax.random.PRNGKey(0)
    k_x, k_e, k_w, k_wt, k_b = jax.random.split(key, 5)

    num_nodes = 16
    input_dim = 8
    output_dim = 32
    num_edges = 48

    # node features
    x = jax.random.normal(k_x, (num_nodes, input_dim), dtype=jnp.float32)
    # edge list [2, E] (source row, target row) and positive edge weights
    adj = jax.random.randint(k_e, (2, num_edges), 0, num_nodes, dtype=jnp.int32)
    edge_weights = jax.random.uniform(
        k_w, (num_edges,), dtype=jnp.float32, minval=0.1, maxval=1.0
    )

    # GCNConv parameters (lin: Linear(input_dim, output_dim, bias=False) + bias)
    scale = (6.0 / (input_dim + output_dim)) ** 0.5
    weight = jax.random.uniform(
        k_wt, (input_dim, output_dim), dtype=jnp.float32, minval=-scale, maxval=scale
    )
    bias = jax.random.uniform(
        k_b, (output_dim,), dtype=jnp.float32, minval=-0.1, maxval=0.1
    )

    out_x, out_adj, out_w = gcn_simple_forward((x, adj, edge_weights), weight, bias)
    jax.block_until_ready(out_x)

    # sanity: shape/dtype, ReLU non-negativity, and match to f32 reference
    assert out_x.shape == (num_nodes, output_dim)
    assert out_x.dtype == jnp.float32
    assert bool(jnp.all(out_x >= 0.0))

    a_hat_ref = _build_normalized_adj_ref(adj, edge_weights, num_nodes)
    ref = jnp.maximum(a_hat_ref @ (x @ weight) + bias[None, :], 0.0)
    assert bool(jnp.allclose(out_x, ref, atol=5e-2, rtol=5e-2)), "mismatch vs reference"

    print("KERNEL_OK")
</pallas_src>

<mosaic_0001>
module attributes {stable_mosaic.version = 11 : i64} {
  func.func @_agg_kernel_h_resident(%arg0: i32, %arg1: i32, %arg2: memref<8x128xbf16, #tpu.memory_space<vmem>>, %arg3: memref<128x128xbf16, #tpu.memory_space<vmem>>, %arg4: memref<1x128xf32, #tpu.memory_space<vmem>>, %arg5: memref<8x128xf32, #tpu.memory_space<vmem>>) attributes {dimension_semantics = [#tpu.dimension_semantics<parallel>, #tpu.dimension_semantics<arbitrary>], iteration_bounds = array<i64: 2, 1>, scalar_prefetch = 0 : i64, scratch_operands = 0 : i64, tpu.core_type = #tpu.core_type<tc>, window_params = [{transform_indices = @transform_0, window_bounds = array<i64: 8, 128>}, {pipeline_mode = #tpu.pipeline_mode<synchronous>, transform_indices = @transform_1, window_bounds = array<i64: 128, 128>}, {pipeline_mode = #tpu.pipeline_mode<synchronous>, transform_indices = @transform_2, window_bounds = array<i64: 1, 128>}, {transform_indices = @transform_3, window_bounds = array<i64: 8, 128>}]} {
    %c0_i32 = arith.constant 0 : i32
    %0 = arith.cmpi eq, %arg1, %c0_i32 : i32
    %1 = arith.extui %0 : i1 to i32
    %c0_i32_0 = arith.constant 0 : i32
    %2 = arith.cmpi ne, %1, %c0_i32_0 : i32
    scf.if %2 {
      %cst_9 = arith.constant 0.000000e+00 : f32
      %15 = vector.broadcast %cst_9 : f32 to vector<8x128xf32>
      %c0_10 = arith.constant 0 : index
      %c0_11 = arith.constant 0 : index
      %16 = vector.load %arg5[%c0_10, %c0_11] : memref<8x128xf32, #tpu.memory_space<vmem>>, vector<8x128xf32>
      tpu.vector_store %arg5[%c0_10, %c0_11], %15 {strides = array<i32>} : memref<8x128xf32, #tpu.memory_space<vmem>>, vector<8x128xf32>,
    } else {
    }
    %c128_i32 = arith.constant 128 : i32
    %3 = arith.muli %arg1, %c128_i32 : i32
    %4 = tpu.assume_multiple %3, 128 : i32
    %c0 = arith.constant 0 : index
    %c0_1 = arith.constant 0 : index
    %5 = vector.load %arg5[%c0, %c0_1] : memref<8x128xf32, #tpu.memory_space<vmem>>, vector<8x128xf32>
    %c0_2 = arith.constant 0 : index
    %c0_3 = arith.constant 0 : index
    %6 = vector.load %arg2[%c0_2, %c0_3] : memref<8x128xbf16, #tpu.memory_space<vmem>>, vector<8x128xbf16>
    %7 = arith.index_cast %4 : i32 to index
    %c0_4 = arith.constant 0 : index
    %8 = vector.load %arg3[%7, %c0_4] : memref<128x128xbf16, #tpu.memory_space<vmem>>, vector<128x128xbf16>
    %cst = arith.constant dense<0.000000e+00> : vector<8x128xf32>
    %9 = tpu.matmul %6, %8, %cst {dimension_numbers = #tpu.dot_dimension_numbers<[1], [0], [0], [1], [0, 0, 1, 1], [], []>} : vector<8x128xbf16>, vector<128x128xbf16>, vector<8x128xf32> -> vector<8x128xf32>
    %10 = arith.addf %5, %9 : vector<8x128xf32>
    %c0_5 = arith.constant 0 : index
    %c0_6 = arith.constant 0 : index
    %11 = vector.load %arg5[%c0_5, %c0_6] : memref<8x128xf32, #tpu.memory_space<vmem>>, vector<8x128xf32>
    tpu.vector_store %arg5[%c0_5, %c0_6], %10 {strides = array<i32>} : memref<8x128xf32, #tpu.memory_space<vmem>>, vector<8x128xf32>,
    %c0_i32_7 = arith.constant 0 : i32
    %12 = arith.cmpi eq, %arg1, %c0_i32_7 : i32
    %13 = arith.extui %12 : i1 to i32
    %c0_i32_8 = arith.constant 0 : i32
    %14 = arith.cmpi ne, %13, %c0_i32_8 : i32
    scf.if %14 {
      %c0_9 = arith.constant 0 : index
      %c0_10 = arith.constant 0 : index
      %15 = vector.load %arg5[%c0_9, %c0_10] : memref<8x128xf32, #tpu.memory_space<vmem>>, vector<8x128xf32>
      %c0_11 = arith.constant 0 : index
      %c0_12 = arith.constant 0 : index
      %16 = vector.load %arg4[%c0_11, %c0_12] : memref<1x128xf32, #tpu.memory_space<vmem>>, vector<1x128xf32>
      %17 = vector.broadcast %16 : vector<1x128xf32> to vector<8x128xf32>
      %18 = arith.addf %15, %17 : vector<8x128xf32>
      %cst_13 = arith.constant 0.000000e+00 : f32
      %19 = vector.broadcast %cst_13 : f32 to vector<8x128xf32>
      %20 = arith.maximumf %18, %19 : vector<8x128xf32>
      %c0_14 = arith.constant 0 : index
      %c0_15 = arith.constant 0 : index
      %21 = vector.load %arg5[%c0_14, %c0_15] : memref<8x128xf32, #tpu.memory_space<vmem>>, vector<8x128xf32>
      tpu.vector_store %arg5[%c0_14, %c0_15], %20 {strides = array<i32>} : memref<8x128xf32, #tpu.memory_space<vmem>>, vector<8x128xf32>,
    } else {
    }
    return
  }
  func.func @transform_0(%arg0: i32, %arg1: i32) -> (i32, i32) {
    %c0_i32 = arith.constant 0 : i32
    return %arg0, %arg1 : i32, i32
  }
  func.func @transform_1(%arg0: i32, %arg1: i32) -> (i32, i32) {
    %c0_i32 = arith.constant 0 : i32
    %c0_i32_0 = arith.constant 0 : i32
    %c0_i32_1 = arith.constant 0 : i32
    return %c0_i32, %c0_i32_0 : i32, i32
  }
  func.func @transform_2(%arg0: i32, %arg1: i32) -> (i32, i32) {
    %c0_i32 = arith.constant 0 : i32
    %c0_i32_0 = arith.constant 0 : i32
    %c0_i32_1 = arith.constant 0 : i32
    return %c0_i32, %c0_i32_0 : i32, i32
  }
  func.func @transform_3(%arg0: i32, %arg1: i32) -> (i32, i32) {
    %c0_i32 = arith.constant 0 : i32
    %c0_i32_0 = arith.constant 0 : i32
    return %arg0, %c0_i32 : i32, i32
  }
}

</mosaic_0001>

<llo_original>
// kernel: tpu_custom_call.1
$region0: #{tpu_custom_call.1}
  #allocation0 [shape = 'u32[]', space=smem, size = 0x4, offset = 0x4, fixed_abs, tag = 'smem constant byte address 0x4 - core index']
  #allocation1 [shape = 'u32[144,128]{1,0:T(1,128)}', space=vmem, size = 0x12000, scoped, tag = 'internal scratch']
  %s0 = inlined_call_operand.hbm [shape: bf16[16,128], index: 0, kind: input, shape index: {}]
  %s1 = inlined_call_operand.hbm [shape: bf16[128,128], index: 1, kind: input, shape index: {}]
  %s2 = inlined_call_operand.vmem [shape: f32[1,128], index: 2, kind: input, shape index: {}]
  %s3 = inlined_call_operand.hbm [shape: f32[16,128], index: 3, kind: output, shape index: {}]
  %s4 = sld [smem:[#allocation0]]
  $region61: #{tpu_custom_call.1} parent=0
    _
  %s6 = ssub.s32 1, %s4
  %s7 = scalar_select 0, %s6, %s4
  $region1: #{tpu_custom_call.1} parent=0
    #allocation2 [shape = 'u8[4096]{0}', space=vmem, size = 0x1000, scoped, tag = 'input window, operand 0']
    #allocation3 [shape = 's32[2]{0}', space=sflag, size = 0x8, scoped, tag = 'scoped memory for tpu_custom_call.1']
    #allocation4 [shape = 's32[2]{0}', space=sflag, size = 0x8, scoped, tag = 'scoped memory for tpu_custom_call.1']
    #allocation5 [shape = 'u8[32768]{0}', space=vmem, size = 0x8000, scoped, tag = 'input window, operand 1, single buffered']
    #allocation6 [shape = 's32[1]{0}', space=sflag, size = 0x4, scoped, tag = 'scoped memory for tpu_custom_call.1']
    #allocation7 [shape = 'u8[8192]{0}', space=vmem, size = 0x2000, scoped, tag = 'output window, operand 0']
    %8 = vsyncpa [#allocation3], 0
    %s9 = scalar_lea.sflag [#allocation3], 1
    %10 = vsyncpa %s9, 0
    %11 = vsyncpa [#allocation6], 0
    %12 = vsyncpa [#allocation4], 0
    %s13 = scalar_lea.sflag [#allocation4], 1
    %14 = vsyncpa %s13, 0
    loop: start=0, step=1, limit=4
    $region2: #{tpu_custom_call.1} parent=1 // loop_pre_header
      _
    $region3: #{tpu_custom_call.1} parent=1 // loop_header
      %s16 = sphi 0, %s20
      %p17 = scmp.ge.s32.totalorder %s16, 4
      %s23 = sphi 0, %s35
      %s24 = sphi 0, %s31
      %s25 = sphi 0, %s23
      %s26 = sphi 0, %s24
      %s27 = sphi 0, %s25
      %s28 = sphi 0, %s26
      %s40 = sphi 0, %s42
      %s43 = sphi 0, %s40
      %s44 = sphi 0, %s43
      %s60 = sphi 0, %s44
      %s64 = sphi 0, %s64
      %s66 = sphi 0, %s64
      %s67 = sphi 0, %s66
      %s81 = sphi 0, %s67
      %s85 = sphi 0, %s85
      %s87 = sphi 0, %s85
      %s88 = sphi 0, %s87
      %s102 = sphi 0, %s88
      %s108 = sphi 0, %s110
      %s111 = sphi 0, %s108
      %s112 = sphi 0, %s111
      %s128 = sphi 0, %s112
    $region4: #{tpu_custom_call.1} parent=1 // loop_header_branch
      %19 = sbr.rel (%p17) target = $region8
    $region5: #{tpu_custom_call.1} parent=1 // loop_body
      %s21 = ssub.s32 %s16, 1
      %s22 = ssub.s32 %s16, 2
      %s29 = sadd.s32 1, %s24
      %p30 = scmp.ge.s32.totalorder %s29, 1
      %s31 = scalar_select %p30, 0, %s29
      %s32 = sadd.s32 1, %s23
      %s33 = scalar_select %p30, %s32, %s23
      %p34 = scmp.ge.s32.totalorder %s33, 2
      %s35 = scalar_select %p34, 0, %s33
      %s36 = ssub.s32 %s23, %s35
      %s37 = ssub.s32 %s24, %s31
      %s38 = sor.u32 %s36, %s37
      %p39 = scmp.eq.s32.totalorder %s38, 0
      %s41 = sadd.s32 %s40, 1
      %s42 = scalar_select %p39, %s40, %s41
      %p45 = pneg %p39
      %p46 = scmp.eq.s32.totalorder %s16, 1
      %p47 = por %p45, %p46
      %p48 = scmp.ne.s32.totalorder %s40, %s43
      %p49 = scmp.eq.s32.totalorder %s16, 0
      %p50 = por %p48, %p49
      %p51 = scmp.ne.s32.totalorder %s40, %s43
      %p52 = scmp.eq.s32.totalorder %s21, 1
      %p53 = por %p51, %p52
      %p54 = scmp.ne.s32.totalorder %s43, %s44
      %p55 = scmp.eq.s32.totalorder %s21, 0
      %p56 = por %p54, %p55
      %p57 = scmp.ne.s32.totalorder %s43, %s44
      %p58 = scmp.eq.s32.totalorder %s22, 1
      %p59 = por %p57, %p58
      %p61 = scmp.ne.s32.totalorder %s44, %s60
      %p62 = scmp.eq.s32.totalorder %s22, 0
      %p63 = por %p61, %p62
      %s65 = sadd.s32 %s64, 1
      %p68 = scmp.eq.s32.totalorder %s16, 1
      %p69 = scmp.ne.s32.totalorder %s64, %s66
      %p70 = scmp.eq.s32.totalorder %s16, 0
      %p71 = por %p69, %p70
      %p72 = scmp.ne.s32.totalorder %s64, %s66
      %p73 = scmp.eq.s32.totalorder %s21, 1
      %p74 = por %p72, %p73
      %p75 = scmp.ne.s32.totalorder %s66, %s67
      %p76 = scmp.eq.s32.totalorder %s21, 0
      %p77 = por %p75, %p76
      %p78 = scmp.ne.s32.totalorder %s66, %s67
      %p79 = scmp.eq.s32.totalorder %s22, 1
      %p80 = por %p78, %p79
      %p82 = scmp.ne.s32.totalorder %s67, %s81
      %p83 = scmp.eq.s32.totalorder %s22, 0
      %p84 = por %p82, %p83
      %s86 = sadd.s32 %s85, 1
      %p89 = scmp.eq.s32.totalorder %s16, 1
      %p90 = scmp.ne.s32.totalorder %s85, %s87
      %p91 = scmp.eq.s32.totalorder %s16, 0
      %p92 = por %p90, %p91
      %p93 = scmp.ne.s32.totalorder %s85, %s87
      %p94 = scmp.eq.s32.totalorder %s21, 1
      %p95 = por %p93, %p94
      %p96 = scmp.ne.s32.totalorder %s87, %s88
      %p97 = scmp.eq.s32.totalorder %s21, 0
      %p98 = por %p96, %p97
      %p99 = scmp.ne.s32.totalorder %s87, %s88
      %p100 = scmp.eq.s32.totalorder %s22, 1
      %p101 = por %p99, %p100
      %p103 = scmp.ne.s32.totalorder %s88, %s102
      %p104 = scmp.eq.s32.totalorder %s22, 0
      %p105 = por %p103, %p104
      %s106 = ssub.s32 %s23, %s35
      %p107 = scmp.eq.s32.totalorder %s106, 0
      %s109 = sadd.s32 %s108, 1
      %s110 = scalar_select %p107, %s108, %s109
      %p113 = pneg %p107
      %p114 = scmp.eq.s32.totalorder %s16, 1
      %p115 = por %p113, %p114
      %p116 = scmp.ne.s32.totalorder %s108, %s111
      %p117 = scmp.eq.s32.totalorder %s16, 0
      %p118 = por %p116, %p117
      %p119 = scmp.ne.s32.totalorder %s108, %s111
      %p120 = scmp.eq.s32.totalorder %s21, 1
      %p121 = por %p119, %p120
      %p122 = scmp.ne.s32.totalorder %s111, %s112
      %p123 = scmp.eq.s32.totalorder %s21, 0
      %p124 = por %p122, %p123
      %p125 = scmp.ne.s32.totalorder %s111, %s112
      %p126 = scmp.eq.s32.totalorder %s22, 1
      %p127 = por %p125, %p126
      %p129 = scmp.ne.s32.totalorder %s112, %s128
      %p130 = scmp.eq.s32.totalorder %s22, 0
      %p131 = por %p129, %p130
      %p132 = scmp.le.s32.totalorder 1, %s16
      %p133 = scmp.lt.s32.totalorder %s16, 3
      %p134 = pnand %p132, %p133
      %p135 = pneg %p134
      // Predicated region
      $region9: #{tpu_custom_call.1} parent=5 // pred_check
        _
      $region10: #{tpu_custom_call.1} parent=5 // pred_check_branch
        %137 = sbr.rel (%p134) target = $region12
      $region11: #{tpu_custom_call.1} parent=5 // pred_region
        %s138 = ssub.s32 %s16, 1
        // Predicated region
        $region13: #{tpu_custom_call.1} parent=11 // pred_check
          %p139 = pneg %p77
        $region14: #{tpu_custom_call.1} parent=11 // pred_check_branch
          %141 = sbr.rel (%p139) target = $region16
        $region15: #{tpu_custom_call.1} parent=11 // pred_region
          %s143 = ssub.s32 1024, 1024
          %144 = vsyncadd [#allocation6], %s143
          %s145 = sshll.u32 [#allocation5], 4
          %s146 = int_to_ptr.vmem [resolvable:$true] %s145
          %151 = dma.hbm_to_vmem [thread:$0]  %s1, 1024, %s146, [#allocation6], 64, 64, 4
        $region16: #{tpu_custom_call.1} parent=11 // pred_fallthru
          _
        // Predicated region
        $region17: #{tpu_custom_call.1} parent=11 // pred_check
          %p152 = pneg %p98
        $region18: #{tpu_custom_call.1} parent=11 // pred_check_branch
          %154 = sbr.rel (%p152) target = $region20
        $region19: #{tpu_custom_call.1} parent=11 // pred_region
          _
        $region20: #{tpu_custom_call.1} parent=11 // pred_fallthru
          _
      $region12: #{tpu_custom_call.1} parent=5 // pred_fallthru
        _
      %p155 = scmp.lt.s32.totalorder %s16, 2
      // Predicated region
      $region21: #{tpu_custom_call.1} parent=5 // pred_check
        %p156 = pneg %p155
      $region22: #{tpu_custom_call.1} parent=5 // pred_check_branch
        %158 = sbr.rel (%p156) target = $region24
      $region23: #{tpu_custom_call.1} parent=5 // pred_region
        // Predicated region
        $region25: #{tpu_custom_call.1} parent=23 // pred_check
          %p159 = pneg %p50
        $region26: #{tpu_custom_call.1} parent=23 // pred_check_branch
          %161 = sbr.rel (%p159) target = $region28
        $region27: #{tpu_custom_call.1} parent=23 // pred_region
          %s162 = sand.u32 %s40, 1
          %s163 = scalar_lea.sflag [#allocation3], %s162
          %s164 = sand.u32 %s40, 1
          %s165 = smul.addr %s164, 4
          %s166 = scalar_lea.vmem [#allocation2], %s165
          %s168 = ssub.s32 64, 64
          %169 = vsyncadd %s163, %s168
          %s170 = sadd.s32 %s24, %s23
          %s171 = smul.addr %s170, 64
          %s172 = scalar_lea.hbm %s0, %s171
          %s174 = sshll.u32 %s166, 4
          %s175 = int_to_ptr.vmem [resolvable:$true] %s174
          %177 = dma.hbm_to_vmem [thread:$0]  %s172, 64, %s175, %s163
        $region28: #{tpu_custom_call.1} parent=23 // pred_fallthru
          _
      $region24: #{tpu_custom_call.1} parent=5 // pred_fallthru
        _
      %p178 = scmp.le.s32.totalorder 1, %s16
      %p179 = scmp.lt.s32.totalorder %s16, 3
      %p180 = pnand %p178, %p179
      %p181 = pneg %p180
      // Predicated region
      $region29: #{tpu_custom_call.1} parent=5 // pred_check
        _
      $region30: #{tpu_custom_call.1} parent=5 // pred_check_branch
        %183 = sbr.rel (%p180) target = $region32
      $region31: #{tpu_custom_call.1} parent=5 // pred_region
        %s184 = ssub.s32 %s16, 1
        %s185 = sand.u32 %s43, 1
        %s186 = scalar_lea.sflag [#allocation3], %s185
        %s187 = sand.u32 %s43, 1
        %s188 = smul.addr %s187, 4
        %s189 = scalar_lea.vmem [#allocation2], %s188
        // Predicated region
        $region33: #{tpu_custom_call.1} parent=31 // pred_check
          %p190 = pneg %p56
        $region34: #{tpu_custom_call.1} parent=31 // pred_check_branch
          %192 = sbr.rel (%p190) target = $region36
        $region35: #{tpu_custom_call.1} parent=31 // pred_region
          %193 = dma.done %s186, 64
        $region36: #{tpu_custom_call.1} parent=31 // pred_fallthru
          _
        // Predicated region
        $region37: #{tpu_custom_call.1} parent=31 // pred_check
          %p194 = pneg %p77
        $region38: #{tpu_custom_call.1} parent=31 // pred_check_branch
          %196 = sbr.rel (%p194) target = $region40
        $region39: #{tpu_custom_call.1} parent=31 // pred_region
          %197 = dma.done [#allocation6], 1024
        $region40: #{tpu_custom_call.1} parent=31 // pred_fallthru
          _
        %s198 = sand.u32 %s43, 1
        %s199 = scalar_lea.sflag [#allocation3], %s198
        %s200 = sand.u32 %s43, 1
        %s201 = smul.addr %s200, 4
        %s202 = scalar_lea.vmem [#allocation2], %s201
        %p203 = pneg %p56
        %p204 = pneg %p53
        %p205 = pneg %p77
        %p206 = pneg %p74
        %p207 = pneg %p98
        %p208 = pneg %p95
        %p209 = pneg %p124
        %p210 = pneg %p121
        %s211 = sand.u32 %s111, 1
        %s212 = scalar_lea.sflag [#allocation4], %s211
        %s213 = sand.u32 %s111, 1
        %s214 = smul.addr %s213, 8
        %s215 = scalar_lea.vmem [#allocation7], %s214
        %p217 = scmp.eq.s32.totalorder %s26, 0
        // Predicated region
        $region41: #{tpu_custom_call.1} parent=31 // pred_check
          %p218 = pneg %p217
        $region42: #{tpu_custom_call.1} parent=31 // pred_check_branch
          %220 = sbr.rel (%p218) target = $region44
        $region43: #{tpu_custom_call.1} parent=31 // pred_region
          %221 = vst [vmem:[%s215] sm:$0xff] 0.0
        $region44: #{tpu_custom_call.1} parent=31 // pred_fallthru
          _
        %s222 = smul.u32 %s26, 128
        %v223 = vld [vmem:[%s215] sm:$0xff]
        %v224 = vld [vmem:[%s189] sm:$0xf]
        %s225 = sshra.s32 %s222, 3
        %s226 = sand.u32 %s222, 7
        %s227 = smul.addr %s225, 4
        %s228 = scalar_lea.vmem [#allocation5], %s227
        %v229 = vld [vmem:[%s228] sm:$0xf]
        %v230 = vld [vmem:[%s228 + $0x4] sm:$0xf]
        %v231 = vld [vmem:[%s228 + $0x8] sm:$0xf]
        %v232 = vld [vmem:[%s228 + $0xc] sm:$0xf]
        %v233 = vld [vmem:[%s228 + $0x10] sm:$0xf]
        %v234 = vld [vmem:[%s228 + $0x14] sm:$0xf]
        %v235 = vld [vmem:[%s228 + $0x18] sm:$0xf]
        %v236 = vld [vmem:[%s228 + $0x1c] sm:$0xf]
        %v237 = vld [vmem:[%s228 + $0x20] sm:$0xf]
        %v238 = vld [vmem:[%s228 + $0x24] sm:$0xf]
        %v239 = vld [vmem:[%s228 + $0x28] sm:$0xf]
        %v240 = vld [vmem:[%s228 + $0x2c] sm:$0xf]
        %v241 = vld [vmem:[%s228 + $0x30] sm:$0xf]
        %v242 = vld [vmem:[%s228 + $0x34] sm:$0xf]
        %v243 = vld [vmem:[%s228 + $0x38] sm:$0xf]
        %v244 = vld [vmem:[%s228 + $0x3c] sm:$0xf]
        %v261 = vunpack.c.l.b16 %v229
        %v262 = vunpack.c.l.b16 %v230
        %v263 = vunpack.c.l.b16 %v231
        %v264 = vunpack.c.l.b16 %v232
        %v265 = vunpack.c.l.b16 %v233
        %v266 = vunpack.c.l.b16 %v234
        %v267 = vunpack.c.l.b16 %v235
        %v268 = vunpack.c.l.b16 %v236
        %v269 = vunpack.c.l.b16 %v237
        %v270 = vunpack.c.l.b16 %v238
        %v271 = vunpack.c.l.b16 %v239
        %v272 = vunpack.c.l.b16 %v240
        %v273 = vunpack.c.l.b16 %v241
        %v274 = vunpack.c.l.b16 %v242
        %v275 = vunpack.c.l.b16 %v243
        %v276 = vunpack.c.l.b16 %v244
        %v277 = vpack.c.b16 %v262, %v261
        %v278 = vpack.c.b16 %v264, %v263
        %v279 = vpack.c.b16 %v266, %v265
        %v280 = vpack.c.b16 %v268, %v267
        %v281 = vpack.c.b16 %v270, %v269
        %v282 = vpack.c.b16 %v272, %v271
        %v283 = vpack.c.b16 %v274, %v273
        %v284 = vpack.c.b16 %v276, %v275
        %293 = vmatprep.subr.bf16.mxu0 0
        %294 = vmatpush1.bf16.msra.mxu0 %v277
        %295 = vmatprep.subr.bf16.mxu0 0
        %296 = vmatpush1.bf16.msra.mxu0 %v278
        %297 = vmatprep.subr.bf16.mxu0 0
        %298 = vmatpush1.bf16.msra.mxu0 %v279
        %299 = vmatprep.subr.bf16.mxu0 0
        %300 = vmatpush1.bf16.msra.mxu0 %v280
        %301 = vmatprep.subr.bf16.mxu0 0
        %302 = vmatpush1.bf16.msra.mxu0 %v281
        %303 = vmatprep.subr.bf16.mxu0 0
        %304 = vmatpush1.bf16.msra.mxu0 %v282
        %305 = vmatprep.subr.bf16.mxu0 0
        %306 = vmatpush1.bf16.msra.mxu0 %v283
        %307 = vmatprep.subr.bf16.mxu0 0
        %308 = vmatpush1.bf16.msra.mxu0 %v284
        %309 = vmatprep.subr.bf16.mxu0 0
        %310 = vmatpush1.bf16.msra.mxu0 0
        %311 = vmatprep.subr.bf16.mxu0 0
        %312 = vmatpush1.bf16.msra.mxu0 0
        %313 = vmatprep.subr.bf16.mxu0 0
        %314 = vmatpush1.bf16.msra.mxu0 0
        %315 = vmatprep.subr.bf16.mxu0 0
        %316 = vmatpush1.bf16.msra.mxu0 0
        %317 = vmatprep.subr.bf16.mxu0 0
        %318 = vmatpush1.bf16.msra.mxu0 0
        %319 = vmatprep.subr.bf16.mxu0 0
        %320 = vmatpush1.bf16.msra.mxu0 0
        %321 = vmatprep.subr.bf16.mxu0 0
        %322 = vmatpush1.bf16.msra.mxu0 0
        %323 = vmatprep.subr.bf16.mxu0 0
        %324 = vmatpush1.bf16.msra.mxu0 0
        %325 = vmatprep.mubr.bf16.mxu0 0
        %326 = vmatmul.mubr.bf16.gmra.mrb[0].mxu0 %v224
        %v327 = vpop.f32.mrb[0].mxu0
        %v328 = vadd.f32 0.0, %v327
        %v329 = vpop.f32.mrb[0].mxu0
        %v330 = vpop.f32.mrb[0].mxu0
        %v331 = vpop.f32.mrb[0].mxu0
        %332 = vdwg.mxu0
        %v333 = vadd.f32 %v223, %v328
        %334 = vst [vmem:[%s215] sm:$0xff] %v333
        // Predicated region
        $region45: #{tpu_custom_call.1} parent=31 // pred_check
          %p335 = pneg %p217
        $region46: #{tpu_custom_call.1} parent=31 // pred_check_branch
          %337 = sbr.rel (%p335) target = $region48
        $region47: #{tpu_custom_call.1} parent=31 // pred_region
          %v338 = vld [vmem:[%s215] sm:$0xff]
          %v339 = vld [vmem:[%s2] sm:$0x1]
          %v341 = vlaneseq
          %v342 = vshrl.u32 %v341, 7
          %v343 = vsub.s32 0, %v342
          %v344 = vrot.slane %v339, %v343
          %v346 = vadd.f32 %v338, %v344
          %v347 = vmax.f32 %v346, 0.0
          %348 = vst [vmem:[%s215] sm:$0xff] %v347
        $region48: #{tpu_custom_call.1} parent=31 // pred_fallthru
          _
        %s349 = sand.u32 %s111, 1
        %s350 = scalar_lea.sflag [#allocation4], %s349
        %s351 = sand.u32 %s111, 1
        %s352 = smul.addr %s351, 8
        %s353 = scalar_lea.vmem [#allocation7], %s352
        // Predicated region
        $region49: #{tpu_custom_call.1} parent=31 // pred_check
          %p354 = pneg %p121
        $region50: #{tpu_custom_call.1} parent=31 // pred_check_branch
          %356 = sbr.rel (%p354) target = $region52
        $region51: #{tpu_custom_call.1} parent=31 // pred_region
          %s358 = ssub.s32 128, 128
          %359 = vsyncadd %s350, %s358
          %s360 = smul.addr %s25, 128
          %s361 = scalar_lea.hbm %s3, %s360
          %s363 = sshll.u32 %s353, 4
          %s364 = int_to_ptr.vmem [resolvable:$true] %s363
          %366 = dma.vmem_to_hbm [thread:$0]  %s364, 128, %s361, %s350
        $region52: #{tpu_custom_call.1} parent=31 // pred_fallthru
          _
      $region32: #{tpu_custom_call.1} parent=5 // pred_fallthru
        _
      %p367 = scmp.le.s32.totalorder 2, %s16
      // Predicated region
      $region53: #{tpu_custom_call.1} parent=5 // pred_check
        %p368 = pneg %p367
      $region54: #{tpu_custom_call.1} parent=5 // pred_check_branch
        %370 = sbr.rel (%p368) target = $region56
      $region55: #{tpu_custom_call.1} parent=5 // pred_region
        %s371 = ssub.s32 %s16, 2
        // Predicated region
        $region57: #{tpu_custom_call.1} parent=55 // pred_check
          %p372 = pneg %p127
        $region58: #{tpu_custom_call.1} parent=55 // pred_check_branch
          %374 = sbr.rel (%p372) target = $region60
        $region59: #{tpu_custom_call.1} parent=55 // pred_region
          %s375 = sand.u32 %s112, 1
          %s376 = scalar_lea.sflag [#allocation4], %s375
          %s377 = sand.u32 %s112, 1
          %s378 = smul.addr %s377, 8
          %s379 = scalar_lea.vmem [#allocation7], %s378
          %380 = dma.done %s376, 128
        $region60: #{tpu_custom_call.1} parent=55 // pred_fallthru
          _
      $region56: #{tpu_custom_call.1} parent=5 // pred_fallthru
        _
    $region6: #{tpu_custom_call.1} parent=1 // loop_footer
      %s20 = sadd.s32 1, %s16
    $region7: #{tpu_custom_call.1} parent=1 // loop_footer_branch
      %15 = sbr.rel target = $region3
    $region8: #{tpu_custom_call.1} parent=1 // loop_exit
      _
    %381 = vsyncpa [#allocation3], 1
    %s382 = scalar_lea.sflag [#allocation3], 1
    %383 = vsyncpa %s382, 1
    %384 = vsyncpa [#allocation6], 1
    %385 = vsyncpa [#allocation4], 1
    %s386 = scalar_lea.sflag [#allocation4], 1
    %387 = vsyncpa %s386, 1

</llo_original>
